<compile_context>
chip_gen: v7x
topology: tpu7x:2x2x1
jax: 0.10.0
libtpu: 0.0.40
codegen_flags: <defaults>
</compile_context>

<pallas_src>
import functools

import jax
import jax.numpy as jnp
from jax.experimental import pallas as pl
from jax.experimental.pallas import tpu as pltpu


def onehot_cnn_kernel(x_ref, w1_ref, b1_ref, w2_ref, b2_ref, w3_ref, b3_ref,
                      out_ref, m_acc, halo, *, k, l_out):
    """One (B_tile, L_tile) grid step of the fused CNN forward.

    x_ref:  (B_tile, L_tile, V)   non-overlapping tile of the one-hot input
    w1_ref: (k*V, C)  flattened conv weight     b1_ref: (1, C)
    w2_ref: (C, 2C)                             b2_ref: (1, 2C)
    w3_ref: (1, 2C)   decoder weight (row)      b3_ref: (1, 1)
    out_ref: (B_tile, 1)
    m_acc:  (B_tile, 2C)          VMEM running max over the sequence dim
    halo:   (B_tile, k-1, V)      trailing x rows carried from the previous tile
    """
    l = pl.program_id(1)

    @pl.when(l == 0)
    def _init():
        # e = relu(...) >= 0 everywhere, so 0 is a valid identity for the max.
        m_acc[...] = jnp.zeros_like(m_acc)
        halo[...] = jnp.zeros_like(halo)

    xt = x_ref[...]                                    # (B_tile, L_tile, V)
    b_tile, l_tile, v = xt.shape
    two_c = w2_ref.shape[1]

    # Window for this step = previous tile's trailing halo ++ current tile.
    if k > 1:
        xa = jnp.concatenate([halo[...], xt], axis=1)  # (B_tile, L_tile+k-1, V)
    else:
        xa = xt

    # ---- Conv1d (valid) as ONE matmul: unfold k shifted slices along lanes ----
    x_unf = jnp.concatenate([xa[:, j:j + l_tile, :] for j in range(k)], axis=-1)
    x_unf = x_unf.reshape(b_tile * l_tile, k * v)      # [B_tile*L_tile, k*V]
    h = jnp.dot(x_unf, w1_ref[...], preferred_element_type=jnp.float32) + b1_ref[...]
    h = jnp.maximum(h, 0.0)                            # ReLU(encoder(...))

    # ---- embedding: Linear(C -> 2C) + ReLU, batch dims collapsed ----
    e = jnp.dot(h, w2_ref[...], preferred_element_type=jnp.float32) + b2_ref[...]
    e = jnp.maximum(e, 0.0).reshape(b_tile, l_tile, two_c)

    # Output positions covered by this step (shifted back by the halo size).
    # Mask positions that fall before 0 (first tile) or beyond the true L_out.
    pos = (l * l_tile - (k - 1)
           + jax.lax.broadcasted_iota(jnp.int32, (1, l_tile, 1), 1))
    e = jnp.where((pos >= 0) & (pos < l_out), e, 0.0)

    # ---- running length max-pool over the sequence dimension ----
    m_acc[...] = jnp.maximum(m_acc[...], jnp.max(e, axis=1))

    # Carry the trailing k-1 input rows for the next step's window.
    if k > 1:
        halo[...] = xt[:, l_tile - (k - 1):, :]

    @pl.when(l == pl.num_programs(1) - 1)
    def _finalize():
        # (dropout is identity at inference / p=0.0)
        # decoder Linear(2C -> 1) as a VPU/XLU reduction: N=1 would waste the MXU.
        m = m_acc[...]
        out_ref[...] = jnp.sum(m * w3_ref[...], axis=-1, keepdims=True) + b3_ref[...]


def onehot_cnn_forward(x, params, *, l_tile_max=256, b_tile_max=8):
    """x: [B, L, V] float32 (hard or relaxed one-hot). Returns [B]."""
    w1, b1, w2, b2, w3, b3 = params
    k, V, C = w1.shape
    w1_flat = w1.reshape(k * V, C)        # conv weight as one [k*V, C] matrix
    w3_row = w3.reshape(1, 2 * C)         # decoder weight as a row vector

    B, L, _ = x.shape
    L_out = L - k + 1
    assert L_out >= 1, "sequence shorter than kernel_size"

    def rup(a, m):
        return (a + m - 1) // m * m

    # L tile: multiple of 8 (sublane constraint), >= k-1 (halo carry),
    # capped at l_tile_max.
    L_tile = max(min(rup(L, 8), rup(l_tile_max, 8)), rup(max(k - 1, 1), 8))
    num_l = pl.cdiv(L, L_tile)
    L_pad = num_l * L_tile

    B_tile = B if B <= b_tile_max else b_tile_max
    B_pad = pl.cdiv(B, B_tile) * B_tile
    num_b = B_pad // B_tile

    # Zero-pad to whole tiles; padded conv outputs are masked inside the kernel,
    # padded batch rows are sliced off below.
    if (B_pad, L_pad) != (B, L):
        x = jnp.pad(x, ((0, B_pad - B), (0, L_pad - L), (0, 0)))

    kernel = functools.partial(onehot_cnn_kernel, k=k, l_out=L_out)

    grid_spec = pltpu.PrefetchScalarGridSpec(
        num_scalar_prefetch=0,
        grid=(num_b, num_l),
        in_specs=[
            # x: new non-overlapping tile each (b, l) step -> pipelined HBM->VMEM DMA.
            pl.BlockSpec((B_tile, L_tile, V), lambda b, l: (b, l, 0)),
            # Parameters: constant block index -> VMEM-resident across grid steps.
            pl.BlockSpec((k * V, C), lambda b, l: (0, 0)),
            pl.BlockSpec((1, C), lambda b, l: (0, 0)),
            pl.BlockSpec((C, 2 * C), lambda b, l: (0, 0)),
            pl.BlockSpec((1, 2 * C), lambda b, l: (0, 0)),
            pl.BlockSpec((1, 2 * C), lambda b, l: (0, 0)),
            pl.BlockSpec((1, 1), lambda b, l: (0, 0)),
        ],
        out_specs=pl.BlockSpec((B_tile, 1), lambda b, l: (b, 0)),
        scratch_shapes=[
            pltpu.VMEM((B_tile, 2 * C), jnp.float32),           # running max
            pltpu.VMEM((B_tile, max(k - 1, 1), V), jnp.float32),  # conv halo carry
        ],
    )

    flops_step = 2 * B_tile * L_tile * (k * V * C + C * 2 * C)
    cost = pl.CostEstimate(
        flops=int(flops_step * num_b * num_l),
        transcendentals=0,
        bytes_accessed=int(x.size * 4 + w1_flat.size * 4 + w2.size * 4
                           + B_pad * 4),
    )

    out = pl.pallas_call(
        kernel,
        out_shape=jax.ShapeDtypeStruct((B_pad, 1), jnp.float32),
        grid_spec=grid_spec,
        compiler_params=pltpu.CompilerParams(
            dimension_semantics=("parallel", "arbitrary"),
            vmem_limit_bytes=32 * 1024 * 1024,
        ),
        cost_estimate=cost,
    )(x, w1_flat, b1, w2, b2, w3_row, b3)
    return out[:B, 0]                      # .squeeze(1) in the PyTorch module


def init_params(key, vocab_size, kernel_size, input_size):
    """Deterministic synthetic parameters (shapes match the PyTorch module)."""
    C = input_size
    k1, k2, k3, k4, k5, k6 = jax.random.split(key, 6)
    # encoder: nn.Conv1d(V, C, k) weight [C, V, k] -> stored as [k, V, C]
    w1 = jax.random.normal(k1, (kernel_size, vocab_size, C), jnp.float32) * 0.1
    b1 = jax.random.normal(k2, (1, C), jnp.float32) * 0.1
    # embedding: nn.Linear(C, 2C) weight [2C, C] -> stored transposed [C, 2C]
    w2 = jax.random.normal(k3, (C, 2 * C), jnp.float32) * 0.1
    b2 = jax.random.normal(k4, (1, 2 * C), jnp.float32) * 0.1
    # decoder: nn.Linear(2C, 1) weight [1, 2C] -> stored transposed [2C, 1]
    w3 = jax.random.normal(k5, (2 * C, 1), jnp.float32) * 0.1
    b3 = jax.random.normal(k6, (1, 1), jnp.float32) * 0.1
    return (w1, b1, w2, b2, w3, b3)


def reference_forward(x, params):
    """Pure-JAX reference mirroring the PyTorch forward (for validation)."""
    w1, b1, w2, b2, w3, b3 = params
    k = w1.shape[0]
    L_out = x.shape[1] - k + 1
    h = sum(jnp.einsum('blv,vc->blc', x[:, j:j + L_out, :], w1[j]) for j in range(k))
    h = jax.nn.relu(h + b1[None])
    e = jax.nn.relu(jnp.einsum('blc,cd->bld', h, w2) + b2[None])
    m = jnp.max(e, axis=1)
    return (m @ w3 + b3)[:, 0]


if __name__ == "__main__":
    key = jax.random.PRNGKey(0)
    kx, kp, kx2 = jax.random.split(key, 3)

    V, kernel_size, input_size = 20, 5, 32
    params = init_params(kp, V, kernel_size, input_size)

    # Case 1: module-default small shapes (single grid step).
    B, L = 2, 16
    tokens = jax.random.randint(kx, (B, L), 0, V)
    x = jax.nn.one_hot(tokens, V, dtype=jnp.float32)         # [B, L, V]
    out = jax.block_until_ready(onehot_cnn_forward(x, params))
    ref = reference_forward(x, params)
    assert out.shape == (B,)
    assert jnp.allclose(out, ref, atol=1e-4, rtol=1e-4)

    # Case 2: exercises the (B, L) grid, halo carry, boundary masking, B tiling.
    B2, L2 = 16, 40
    tokens2 = jax.random.randint(kx2, (B2, L2), 0, V)
    x2 = jax.nn.one_hot(tokens2, V, dtype=jnp.float32)
    out2 = jax.block_until_ready(onehot_cnn_forward(x2, params, l_tile_max=8))
    ref2 = reference_forward(x2, params)
    assert out2.shape == (B2,)
    assert jnp.allclose(out2, ref2, atol=1e-4, rtol=1e-4)

    print("KERNEL_OK")
</pallas_src>

<mosaic_0001>
module attributes {stable_mosaic.version = 11 : i64} {
  func.func @onehot_cnn_kernel(%arg0: i32, %arg1: i32, %arg2: memref<2x16x20xf32, #tpu.memory_space<vmem>>, %arg3: memref<100x32xf32, #tpu.memory_space<vmem>>, %arg4: memref<1x32xf32, #tpu.memory_space<vmem>>, %arg5: memref<32x64xf32, #tpu.memory_space<vmem>>, %arg6: memref<1x64xf32, #tpu.memory_space<vmem>>, %arg7: memref<1x64xf32, #tpu.memory_space<vmem>>, %arg8: memref<1x1xf32, #tpu.memory_space<vmem>>, %arg9: memref<2x1xf32, #tpu.memory_space<vmem>>, %arg10: memref<2x64xf32, #tpu.memory_space<vmem>>, %arg11: memref<2x4x20xf32, #tpu.memory_space<vmem>>) attributes {dimension_semantics = [#tpu.dimension_semantics<parallel>, #tpu.dimension_semantics<arbitrary>], iteration_bounds = array<i64: 1, 1>, scalar_prefetch = 0 : i64, scratch_operands = 2 : i64, tpu.core_type = #tpu.core_type<tc>, window_params = [{transform_indices = @transform_0, window_bounds = array<i64: 2, 16, 20>}, {pipeline_mode = #tpu.pipeline_mode<synchronous>, transform_indices = @transform_1, window_bounds = array<i64: 100, 32>}, {pipeline_mode = #tpu.pipeline_mode<synchronous>, transform_indices = @transform_2, window_bounds = array<i64: 1, 32>}, {pipeline_mode = #tpu.pipeline_mode<synchronous>, transform_indices = @transform_3, window_bounds = array<i64: 32, 64>}, {pipeline_mode = #tpu.pipeline_mode<synchronous>, transform_indices = @transform_4, window_bounds = array<i64: 1, 64>}, {pipeline_mode = #tpu.pipeline_mode<synchronous>, transform_indices = @transform_5, window_bounds = array<i64: 1, 64>}, {pipeline_mode = #tpu.pipeline_mode<synchronous>, transform_indices = @transform_6, window_bounds = array<i64: 1, 1>}, {transform_indices = @transform_7, window_bounds = array<i64: 2, 1>}]} {
    %c0_i32 = arith.constant 0 : i32
    %0 = arith.cmpi eq, %arg1, %c0_i32 : i32
    %1 = arith.extui %0 : i1 to i32
    %c0_i32_0 = arith.constant 0 : i32
    %2 = arith.cmpi ne, %1, %c0_i32_0 : i32
    scf.if %2 {
      %cst_29 = arith.constant 0.000000e+00 : f32
      %51 = vector.broadcast %cst_29 : f32 to vector<2x64xf32>
      %c0_30 = arith.constant 0 : index
      %c0_31 = arith.constant 0 : index
      %52 = vector.load %arg10[%c0_30, %c0_31] : memref<2x64xf32, #tpu.memory_space<vmem>>, vector<2x64xf32>
      tpu.vector_store %arg10[%c0_30, %c0_31], %51 {strides = array<i32>} : memref<2x64xf32, #tpu.memory_space<vmem>>, vector<2x64xf32>,
      %cst_32 = arith.constant 0.000000e+00 : f32
      %53 = vector.broadcast %cst_32 : f32 to vector<2x4x20xf32>
      %c0_33 = arith.constant 0 : index
      %c0_34 = arith.constant 0 : index
      %c0_35 = arith.constant 0 : index
      %54 = vector.load %arg11[%c0_33, %c0_34, %c0_35] : memref<2x4x20xf32, #tpu.memory_space<vmem>>, vector<2x4x20xf32>
      tpu.vector_store %arg11[%c0_33, %c0_34, %c0_35], %53 {strides = array<i32>} : memref<2x4x20xf32, #tpu.memory_space<vmem>>, vector<2x4x20xf32>,
    } else {
    }
    %c0 = arith.constant 0 : index
    %c0_1 = arith.constant 0 : index
    %c0_2 = arith.constant 0 : index
    %3 = vector.load %arg2[%c0, %c0_1, %c0_2] : memref<2x16x20xf32, #tpu.memory_space<vmem>>, vector<2x16x20xf32>
    %c0_3 = arith.constant 0 : index
    %c0_4 = arith.constant 0 : index
    %c0_5 = arith.constant 0 : index
    %4 = vector.load %arg11[%c0_3, %c0_4, %c0_5] : memref<2x4x20xf32, #tpu.memory_space<vmem>>, vector<2x4x20xf32>
    %5 = tpu.concatenate %4, %3 in 1 : vector<2x4x20xf32>, vector<2x16x20xf32> -> vector<2x20x20xf32>
    %6 = vector.extract_strided_slice %5 {offsets = [0, 0, 0], sizes = [2, 16, 20], strides = [1, 1, 1]} : vector<2x20x20xf32> to vector<2x16x20xf32>
    %7 = vector.extract_strided_slice %5 {offsets = [0, 1, 0], sizes = [2, 16, 20], strides = [1, 1, 1]} : vector<2x20x20xf32> to vector<2x16x20xf32>
    %8 = vector.extract_strided_slice %5 {offsets = [0, 2, 0], sizes = [2, 16, 20], strides = [1, 1, 1]} : vector<2x20x20xf32> to vector<2x16x20xf32>
    %9 = vector.extract_strided_slice %5 {offsets = [0, 3, 0], sizes = [2, 16, 20], strides = [1, 1, 1]} : vector<2x20x20xf32> to vector<2x16x20xf32>
    %10 = vector.extract_strided_slice %5 {offsets = [0, 4, 0], sizes = [2, 16, 20], strides = [1, 1, 1]} : vector<2x20x20xf32> to vector<2x16x20xf32>
    %11 = tpu.concatenate %6, %7, %8, %9, %10 in 2 : vector<2x16x20xf32>, vector<2x16x20xf32>, vector<2x16x20xf32>, vector<2x16x20xf32>, vector<2x16x20xf32> -> vector<2x16x100xf32>
    %12 = vector.shape_cast %11 : vector<2x16x100xf32> to vector<32x100xf32>
    %c0_6 = arith.constant 0 : index
    %c0_7 = arith.constant 0 : index
    %13 = vector.load %arg3[%c0_6, %c0_7] : memref<100x32xf32, #tpu.memory_space<vmem>>, vector<100x32xf32>
    %cst = arith.constant dense<0.000000e+00> : vector<32x32xf32>
    %14 = tpu.matmul %12, %13, %cst {dimension_numbers = #tpu.dot_dimension_numbers<[1], [0], [0], [1], [0, 0, 1, 1], [], []>} : vector<32x100xf32>, vector<100x32xf32>, vector<32x32xf32> -> vector<32x32xf32>
    %c0_8 = arith.constant 0 : index
    %c0_9 = arith.constant 0 : index
    %15 = vector.load %arg4[%c0_8, %c0_9] : memref<1x32xf32, #tpu.memory_space<vmem>>, vector<1x32xf32>
    %16 = vector.broadcast %15 : vector<1x32xf32> to vector<32x32xf32>
    %17 = arith.addf %14, %16 : vector<32x32xf32>
    %cst_10 = arith.constant 0.000000e+00 : f32
    %18 = vector.broadcast %cst_10 : f32 to vector<32x32xf32>
    %19 = arith.maximumf %17, %18 : vector<32x32xf32>
    %c0_11 = arith.constant 0 : index
    %c0_12 = arith.constant 0 : index
    %20 = vector.load %arg5[%c0_11, %c0_12] : memref<32x64xf32, #tpu.memory_space<vmem>>, vector<32x64xf32>
    %cst_13 = arith.constant dense<0.000000e+00> : vector<32x64xf32>
    %21 = tpu.matmul %19, %20, %cst_13 {dimension_numbers = #tpu.dot_dimension_numbers<[1], [0], [0], [1], [0, 0, 1, 1], [], []>} : vector<32x32xf32>, vector<32x64xf32>, vector<32x64xf32> -> vector<32x64xf32>
    %c0_14 = arith.constant 0 : index
    %c0_15 = arith.constant 0 : index
    %22 = vector.load %arg6[%c0_14, %c0_15] : memref<1x64xf32, #tpu.memory_space<vmem>>, vector<1x64xf32>
    %23 = vector.broadcast %22 : vector<1x64xf32> to vector<32x64xf32>
    %24 = arith.addf %21, %23 : vector<32x64xf32>
    %cst_16 = arith.constant 0.000000e+00 : f32
    %25 = vector.broadcast %cst_16 : f32 to vector<32x64xf32>
    %26 = arith.maximumf %24, %25 : vector<32x64xf32>
    %27 = vector.shape_cast %26 : vector<32x64xf32> to vector<2x16x64xf32>
    %c16_i32 = arith.constant 16 : i32
    %28 = arith.muli %arg1, %c16_i32 : i32
    %c4_i32 = arith.constant 4 : i32
    %29 = arith.subi %28, %c4_i32 : i32
    %30 = tpu.iota {dimensions = array<i32: 1>} : vector<1x16x1xi32>
    %31 = vector.broadcast %29 : i32 to vector<1x16x1xi32>
    %32 = arith.addi %31, %30 : vector<1x16x1xi32>
    %c0_i32_17 = arith.constant 0 : i32
    %33 = vector.broadcast %c0_i32_17 : i32 to vector<1x16x1xi32>
    %34 = arith.cmpi sge, %32, %33 : vector<1x16x1xi32>
    %c12_i32 = arith.constant 12 : i32
    %35 = vector.broadcast %c12_i32 : i32 to vector<1x16x1xi32>
    %36 = arith.cmpi slt, %32, %35 : vector<1x16x1xi32>
    %37 = arith.andi %34, %36 : vector<1x16x1xi1>
    %cst_18 = arith.constant 0.000000e+00 : f32
    %38 = vector.shape_cast %37 : vector<1x16x1xi1> to vector<1x16x1xi1>
    %39 = vector.broadcast %38 : vector<1x16x1xi1> to vector<2x16x64xi1>
    %40 = vector.broadcast %cst_18 : f32 to vector<2x16x64xf32>
    %41 = arith.select %39, %27, %40 : vector<2x16x64xi1>, vector<2x16x64xf32>
    %c0_19 = arith.constant 0 : index
    %c0_20 = arith.constant 0 : index
    %42 = vector.load %arg10[%c0_19, %c0_20] : memref<2x64xf32, #tpu.memory_space<vmem>>, vector<2x64xf32>
    %cst_21 = arith.constant dense<0xFF800000> : vector<2x64xf32>
    %43 = vector.multi_reduction <maximumf>, %41, %cst_21 [1] : vector<2x16x64xf32> to vector<2x64xf32>
    %44 = arith.maximumf %42, %43 : vector<2x64xf32>
    %c0_22 = arith.constant 0 : index
    %c0_23 = arith.constant 0 : index
    %45 = vector.load %arg10[%c0_22, %c0_23] : memref<2x64xf32, #tpu.memory_space<vmem>>, vector<2x64xf32>
    tpu.vector_store %arg10[%c0_22, %c0_23], %44 {strides = array<i32>} : memref<2x64xf32, #tpu.memory_space<vmem>>, vector<2x64xf32>,
    %46 = vector.extract_strided_slice %3 {offsets = [0, 12, 0], sizes = [2, 4, 20], strides = [1, 1, 1]} : vector<2x16x20xf32> to vector<2x4x20xf32>
    %c0_24 = arith.constant 0 : index
    %c0_25 = arith.constant 0 : index
    %c0_26 = arith.constant 0 : index
    %47 = vector.load %arg11[%c0_24, %c0_25, %c0_26] : memref<2x4x20xf32, #tpu.memory_space<vmem>>, vector<2x4x20xf32>
    tpu.vector_store %arg11[%c0_24, %c0_25, %c0_26], %46 {strides = array<i32>} : memref<2x4x20xf32, #tpu.memory_space<vmem>>, vector<2x4x20xf32>,
    %c0_i32_27 = arith.constant 0 : i32
    %48 = arith.cmpi eq, %arg1, %c0_i32_27 : i32
    %49 = arith.extui %48 : i1 to i32
    %c0_i32_28 = arith.constant 0 : i32
    %50 = arith.cmpi ne, %49, %c0_i32_28 : i32
    scf.if %50 {
      %c0_29 = arith.constant 0 : index
      %c0_30 = arith.constant 0 : index
      %51 = vector.load %arg10[%c0_29, %c0_30] : memref<2x64xf32, #tpu.memory_space<vmem>>, vector<2x64xf32>
      %c0_31 = arith.constant 0 : index
      %c0_32 = arith.constant 0 : index
      %52 = vector.load %arg7[%c0_31, %c0_32] : memref<1x64xf32, #tpu.memory_space<vmem>>, vector<1x64xf32>
      %53 = vector.broadcast %52 : vector<1x64xf32> to vector<2x64xf32>
      %54 = arith.mulf %51, %53 : vector<2x64xf32>
      %cst_33 = arith.constant dense<0.000000e+00> : vector<2xf32>
      %55 = vector.multi_reduction <add>, %54, %cst_33 [1] : vector<2x64xf32> to vector<2xf32>
      %56 = vector.shape_cast %55 : vector<2xf32> to vector<2x1xf32>
      %c0_34 = arith.constant 0 : index
      %c0_35 = arith.constant 0 : index
      %57 = vector.load %arg8[%c0_34, %c0_35] : memref<1x1xf32, #tpu.memory_space<vmem>>, vector<1x1xf32>
      %58 = vector.broadcast %57 : vector<1x1xf32> to vector<2x1xf32>
      %59 = arith.addf %56, %58 : vector<2x1xf32>
      %c0_36 = arith.constant 0 : index
      %c0_37 = arith.constant 0 : index
      %60 = vector.load %arg9[%c0_36, %c0_37] : memref<2x1xf32, #tpu.memory_space<vmem>>, vector<2x1xf32>
      tpu.vector_store %arg9[%c0_36, %c0_37], %59 {strides = array<i32>} : memref<2x1xf32, #tpu.memory_space<vmem>>, vector<2x1xf32>,
    } else {
    }
    return
  }
  func.func @transform_0(%arg0: i32, %arg1: i32) -> (i32, i32, i32) {
    %c0_i32 = arith.constant 0 : i32
    %c0_i32_0 = arith.constant 0 : i32
    return %arg0, %arg1, %c0_i32 : i32, i32, i32
  }
  func.func @transform_1(%arg0: i32, %arg1: i32) -> (i32, i32) {
    %c0_i32 = arith.constant 0 : i32
    %c0_i32_0 = arith.constant 0 : i32
    %c0_i32_1 = arith.constant 0 : i32
    return %c0_i32, %c0_i32_0 : i32, i32
  }
  func.func @transform_2(%arg0: i32, %arg1: i32) -> (i32, i32) {
    %c0_i32 = arith.constant 0 : i32
    %c0_i32_0 = arith.constant 0 : i32
    %c0_i32_1 = arith.constant 0 : i32
    return %c0_i32, %c0_i32_0 : i32, i32
  }
  func.func @transform_3(%arg0: i32, %arg1: i32) -> (i32, i32) {
    %c0_i32 = arith.constant 0 : i32
    %c0_i32_0 = arith.constant 0 : i32
    %c0_i32_1 = arith.constant 0 : i32
    return %c0_i32, %c0_i32_0 : i32, i32
  }
  func.func @transform_4(%arg0: i32, %arg1: i32) -> (i32, i32) {
    %c0_i32 = arith.constant 0 : i32
    %c0_i32_0 = arith.constant 0 : i32
    %c0_i32_1 = arith.constant 0 : i32
    return %c0_i32, %c0_i32_0 : i32, i32
  }
  func.func @transform_5(%arg0: i32, %arg1: i32) -> (i32, i32) {
    %c0_i32 = arith.constant 0 : i32
    %c0_i32_0 = arith.constant 0 : i32
    %c0_i32_1 = arith.constant 0 : i32
    return %c0_i32, %c0_i32_0 : i32, i32
  }
  func.func @transform_6(%arg0: i32, %arg1: i32) -> (i32, i32) {
    %c0_i32 = arith.constant 0 : i32
    %c0_i32_0 = arith.constant 0 : i32
    %c0_i32_1 = arith.constant 0 : i32
    return %c0_i32, %c0_i32_0 : i32, i32
  }
  func.func @transform_7(%arg0: i32, %arg1: i32) -> (i32, i32) {
    %c0_i32 = arith.constant 0 : i32
    %c0_i32_0 = arith.constant 0 : i32
    return %arg0, %c0_i32 : i32, i32
  }
}

</mosaic_0001>

<llo_original>
// kernel: tpu_custom_call.1
$region0: #{tpu_custom_call.1}
  #allocation0 [shape = 'u32[]', space=smem, size = 0x4, offset = 0x4, fixed_abs, tag = 'smem constant byte address 0x4 - core index']
  #allocation1 [shape = 'u32[144,128]{1,0:T(1,128)}', space=vmem, size = 0x12000, scoped, tag = 'internal scratch']
  #allocation2 [shape = 'f32[2,64]{1,0:T(2,128)}', space=vmem, size = 0x400, scoped, tag = 'scratch operand']
  #allocation3 [shape = 'f32[2,4,20]{2,1,0:T(4,128)}', space=vmem, size = 0x1000, scoped, tag = 'scratch operand']
  #allocation4 [shape = 'f32[1,1]{1,0:T(1,128)S(1)}', space=vmem, size = 0x200, scoped, tag = 'scoped memory for tpu_custom_call.1']
  %s0 = inlined_call_operand.vmem [shape: f32[2,16,20], index: 0, kind: input, shape index: {}]
  %s1 = inlined_call_operand.vmem [shape: f32[100,32], index: 1, kind: input, shape index: {}]
  %s2 = inlined_call_operand.vmem [shape: f32[1,32], index: 2, kind: input, shape index: {}]
  %s3 = inlined_call_operand.vmem [shape: f32[32,64], index: 3, kind: input, shape index: {}]
  %s4 = inlined_call_operand.vmem [shape: f32[1,64], index: 4, kind: input, shape index: {}]
  %s5 = inlined_call_operand.vmem [shape: f32[1,64], index: 5, kind: input, shape index: {}]
  %s6 = inlined_call_operand.<no memory space> [shape: f32[1,1], index: 6, kind: input, shape index: {}]
  %s7 = inlined_call_operand.vmem [shape: f32[2,1], index: 7, kind: output, shape index: {}]
  %s8 = sld [smem:[#allocation0]]
  $region46: #{tpu_custom_call.1} parent=0
    _
  %s10 = ssub.s32 1, %s8
  %s11 = scalar_select 0, %s10, %s8
  %v12 = vstv %s6
  %13 = vst [vmem:[#allocation4] sm:$0x1] %v12
  // Predicated region
  $region2: #{tpu_custom_call.1} parent=0 // pred_check
    _
  $region3: #{tpu_custom_call.1} parent=0 // pred_check_branch
    %15 = sbr.rel (0) target = $region5
  $region4: #{tpu_custom_call.1} parent=0 // pred_region
    _
  $region5: #{tpu_custom_call.1} parent=0 // pred_fallthru
    _
  // Predicated region
  $region6: #{tpu_custom_call.1} parent=0 // pred_check
    _
  $region7: #{tpu_custom_call.1} parent=0 // pred_check_branch
    %17 = sbr.rel (0) target = $region9
  $region8: #{tpu_custom_call.1} parent=0 // pred_region
    _
  $region9: #{tpu_custom_call.1} parent=0 // pred_fallthru
    _
  // Predicated region
  $region10: #{tpu_custom_call.1} parent=0 // pred_check
    _
  $region11: #{tpu_custom_call.1} parent=0 // pred_check_branch
    %19 = sbr.rel (0) target = $region13
  $region12: #{tpu_custom_call.1} parent=0 // pred_region
    _
  $region13: #{tpu_custom_call.1} parent=0 // pred_fallthru
    _
  // Predicated region
  $region14: #{tpu_custom_call.1} parent=0 // pred_check
    _
  $region15: #{tpu_custom_call.1} parent=0 // pred_check_branch
    %21 = sbr.rel (0) target = $region17
  $region16: #{tpu_custom_call.1} parent=0 // pred_region
    _
  $region17: #{tpu_custom_call.1} parent=0 // pred_fallthru
    _
  // Predicated region
  $region18: #{tpu_custom_call.1} parent=0 // pred_check
    _
  $region19: #{tpu_custom_call.1} parent=0 // pred_check_branch
    %23 = sbr.rel (0) target = $region21
  $region20: #{tpu_custom_call.1} parent=0 // pred_region
    _
  $region21: #{tpu_custom_call.1} parent=0 // pred_fallthru
    _
  // Predicated region
  $region22: #{tpu_custom_call.1} parent=0 // pred_check
    _
  $region23: #{tpu_custom_call.1} parent=0 // pred_check_branch
    %25 = sbr.rel (0) target = $region25
  $region24: #{tpu_custom_call.1} parent=0 // pred_region
    _
  $region25: #{tpu_custom_call.1} parent=0 // pred_fallthru
    _
  // Predicated region
  $region26: #{tpu_custom_call.1} parent=0 // pred_check
    _
  $region27: #{tpu_custom_call.1} parent=0 // pred_check_branch
    %27 = sbr.rel (0) target = $region29
  $region28: #{tpu_custom_call.1} parent=0 // pred_region
    _
  $region29: #{tpu_custom_call.1} parent=0 // pred_fallthru
    _
  %p28 = scmp.eq.s32.totalorder 0, 0
  // Predicated region
  $region30: #{tpu_custom_call.1} parent=0 // pred_check
    %p29 = pneg %p28
  $region31: #{tpu_custom_call.1} parent=0 // pred_check_branch
    %31 = sbr.rel (%p29) target = $region33
  $region32: #{tpu_custom_call.1} parent=0 // pred_region
    %vm32 = vcmask 517120
    %33 = vst.msk [vmem:[#allocation2] sm:$0x3] %vm32, 0.0
    %vm34 = vcmask 158720
    %35 = vst.msk [vmem:[#allocation3] sm:$0xf] %vm34, 0.0
    %36 = vst.msk [vmem:[#allocation3 + $0x4] sm:$0xf] %vm34, 0.0
  $region33: #{tpu_custom_call.1} parent=0 // pred_fallthru
    _
  %v37 = vld [vmem:[%s0] sm:$0xff]
  %v38 = vld [vmem:[%s0 + $0x8] sm:$0xff]
  %v39 = vld [vmem:[%s0 + $0x10] sm:$0xff]
  %v40 = vld [vmem:[%s0 + $0x18] sm:$0xff]
  %v41 = vld [vmem:[#allocation3] sm:$0xf]
  %v42 = vld [vmem:[#allocation3 + $0x4] sm:$0xf]
  %vm47 = vcmask 1043456
  %v48 = vrot.slane %v37, 4
  %v49 = vrot.slane %v38, 4
  %v50 = vsel %vm47, %v48, %v49
  %v51 = vrot.slane %v39, 4
  %v52 = vrot.slane %v40, 4
  %v53 = vsel %vm47, %v51, %v52
  %v58 = vsel %vm47, %v41, %v48
  %v59 = vsel %vm47, %v42, %v51
  %vm62 = vcmask 1046528
  %v63 = vrot.slane %v58, 1
  %v64 = vrot.slane %v50, 1
  %v65 = vsel %vm62, %v63, %v64
  %v66 = vrot.slane %v49, 1
  %v67 = vsel %vm62, %v64, %v66
  %v68 = vrot.slane %v59, 1
  %v69 = vrot.slane %v53, 1
  %v70 = vsel %vm62, %v68, %v69
  %v71 = vrot.slane %v52, 1
  %v72 = vsel %vm62, %v69, %v71
  %73 = vrot.lane.b32.xlu0 %v65, 20
  %v74 = vpop.permute.xlu0 %73
  %75 = vrot.lane.b32.xlu0 %v67, 20
  %v76 = vpop.permute.xlu0 %75
  %77 = vrot.lane.b32.xlu0 %v70, 20
  %v78 = vpop.permute.xlu0 %77
  %79 = vrot.lane.b32.xlu0 %v72, 20
  %v80 = vpop.permute.xlu0 %79
  %vm85 = vcmask 1045504
  %v86 = vrot.slane %v58, 2
  %v87 = vrot.slane %v50, 2
  %v88 = vsel %vm85, %v86, %v87
  %v89 = vrot.slane %v49, 2
  %v90 = vsel %vm85, %v87, %v89
  %v91 = vrot.slane %v59, 2
  %v92 = vrot.slane %v53, 2
  %v93 = vsel %vm85, %v91, %v92
  %v94 = vrot.slane %v52, 2
  %v95 = vsel %vm85, %v92, %v94
  %96 = vrot.lane.b32.xlu0 %v88, 40
  %v97 = vpop.permute.xlu0 %96
  %98 = vrot.lane.b32.xlu0 %v90, 40
  %v99 = vpop.permute.xlu0 %98
  %100 = vrot.lane.b32.xlu0 %v93, 40
  %v101 = vpop.permute.xlu0 %100
  %102 = vrot.lane.b32.xlu0 %v95, 40
  %v103 = vpop.permute.xlu0 %102
  %vm108 = vcmask 1044480
  %v109 = vrot.slane %v58, 3
  %v110 = vrot.slane %v50, 3
  %v111 = vsel %vm108, %v109, %v110
  %v112 = vrot.slane %v49, 3
  %v113 = vsel %vm108, %v110, %v112
  %v114 = vrot.slane %v59, 3
  %v115 = vrot.slane %v53, 3
  %v116 = vsel %vm108, %v114, %v115
  %v117 = vrot.slane %v52, 3
  %v118 = vsel %vm108, %v115, %v117
  %119 = vrot.lane.b32.xlu0 %v111, 60
  %v120 = vpop.permute.xlu0 %119
  %121 = vrot.lane.b32.xlu0 %v113, 60
  %v122 = vpop.permute.xlu0 %121
  %123 = vrot.lane.b32.xlu0 %v116, 60
  %v124 = vpop.permute.xlu0 %123
  %125 = vrot.lane.b32.xlu0 %v118, 60
  %v126 = vpop.permute.xlu0 %125
  %v131 = vrot.slane %v58, 4
  %v132 = vrot.slane %v50, 4
  %v133 = vsel %vm47, %v131, %v132
  %v134 = vrot.slane %v49, 4
  %v135 = vsel %vm47, %v132, %v134
  %v136 = vrot.slane %v59, 4
  %v137 = vrot.slane %v53, 4
  %v138 = vsel %vm47, %v136, %v137
  %v139 = vrot.slane %v52, 4
  %v140 = vsel %vm47, %v137, %v139
  %141 = vrot.lane.b32.xlu0 %v133, 80
  %v142 = vpop.permute.xlu0 %141
  %143 = vrot.lane.b32.xlu0 %v135, 80
  %v144 = vpop.permute.xlu0 %143
  %145 = vrot.lane.b32.xlu0 %v138, 80
  %v146 = vpop.permute.xlu0 %145
  %147 = vrot.lane.b32.xlu0 %v140, 80
  %v148 = vpop.permute.xlu0 %147
  %vm153 = vcmask 162816
  %v154 = vsel %vm153, %v58, %v74
  %v155 = vsel %vm153, %v50, %v76
  %v156 = vsel %vm153, %v59, %v78
  %v157 = vsel %vm153, %v53, %v80
  %vm158 = vcmask 326656
  %v159 = vsel %vm158, %v154, %v97
  %v160 = vsel %vm158, %v155, %v99
  %v161 = vsel %vm158, %v156, %v101
  %v162 = vsel %vm158, %v157, %v103
  %vm163 = vcmask 490496
  %v164 = vsel %vm163, %v159, %v120
  %v165 = vsel %vm163, %v160, %v122
  %v166 = vsel %vm163, %v161, %v124
  %v167 = vsel %vm163, %v162, %v126
  %vm168 = vcmask 654336
  %v169 = vsel %vm168, %v164, %v142
  %v170 = vsel %vm168, %v165, %v144
  %v171 = vsel %vm168, %v166, %v146
  %v172 = vsel %vm168, %v167, %v148
  %v173 = vld [vmem:[%s1] sm:$0xff]
  %v174 = vld [vmem:[%s1 + $0x8] sm:$0xff]
  %v175 = vld [vmem:[%s1 + $0x10] sm:$0xff]
  %v176 = vld [vmem:[%s1 + $0x18] sm:$0xff]
  %v177 = vld [vmem:[%s1 + $0x20] sm:$0xff]
  %v178 = vld [vmem:[%s1 + $0x28] sm:$0xff]
  %v179 = vld [vmem:[%s1 + $0x30] sm:$0xff]
  %v180 = vld [vmem:[%s1 + $0x38] sm:$0xff]
  %v181 = vld [vmem:[%s1 + $0x40] sm:$0xff]
  %v182 = vld [vmem:[%s1 + $0x48] sm:$0xff]
  %v183 = vld [vmem:[%s1 + $0x50] sm:$0xff]
  %v184 = vld [vmem:[%s1 + $0x58] sm:$0xff]
  %v185 = vld [vmem:[%s1 + $0x60] sm:$0xf]
  %v186 = vld [vmem:[%s2] sm:$0x1]
  %v188 = vlaneseq
  %v189 = vshrl.u32 %v188, 7
  %v190 = vsub.s32 0, %v189
  %v191 = vrot.slane %v186, %v190
  %vm193 = vcmask 818176
  %v195 = vsel %vm193, %v169, 0
  %v198 = vsel %vm193, %v170, 0
  %v201 = vsel %vm193, %v171, 0
  %v204 = vsel %vm193, %v172, 0
  %v207 = vsel %vm47, %v185, 0
  %209 = vmatprep.subr.mxu0 0.0
  %210 = vmatpush1.msra.mxu0 %v173
  %211 = vmatprep.subr.mxu0 0.0
  %212 = vmatpush1.msra.mxu0 %v174
  %213 = vmatprep.subr.mxu0 0.0
  %214 = vmatpush1.msra.mxu0 %v175
  %215 = vmatprep.subr.mxu0 0.0
  %216 = vmatpush1.msra.mxu0 %v176
  %217 = vmatprep.subr.mxu0 0.0
  %218 = vmatpush1.msra.mxu0 %v177
  %219 = vmatprep.subr.mxu0 0.0
  %220 = vmatpush1.msra.mxu0 %v178
  %221 = vmatprep.subr.mxu0 0.0
  %222 = vmatpush1.msra.mxu0 %v179
  %223 = vmatprep.subr.mxu0 0.0
  %224 = vmatpush1.msra.mxu0 %v180
  %225 = vmatprep.subr.mxu0 0.0
  %226 = vmatpush1.msra.mxu0 %v181
  %227 = vmatprep.subr.mxu0 0.0
  %228 = vmatpush1.msra.mxu0 %v182
  %229 = vmatprep.subr.mxu0 0.0
  %230 = vmatpush1.msra.mxu0 %v183
  %231 = vmatprep.subr.mxu0 0.0
  %232 = vmatpush1.msra.mxu0 %v184
  %233 = vmatprep.subr.mxu0 0.0
  %234 = vmatpush1.msra.mxu0 %v207
  %235 = vmatprep.subr.mxu0 0.0
  %236 = vmatpush1.msra.mxu0 0.0
  %237 = vmatprep.subr.mxu0 0.0
  %238 = vmatpush1.msra.mxu0 0.0
  %239 = vmatprep.subr.mxu0 0.0
  %240 = vmatpush1.msra.mxu0 0.0
  %241 = vmatprep.subr.mxu0 0.0
  %242 = vmatpush1.msra.mxu0 0.0
  %243 = vmatprep.subr.mxu0 0.0
  %244 = vmatpush1.msra.mxu0 0.0
  %245 = vmatprep.subr.mxu0 0.0
  %246 = vmatpush1.msra.mxu0 0.0
  %247 = vmatprep.subr.mxu0 0.0
  %248 = vmatpush1.msra.mxu0 0.0
  %249 = vmatprep.subr.mxu0 0.0
  %250 = vmatpush1.msra.mxu0 0.0
  %251 = vmatprep.subr.mxu0 0.0
  %252 = vmatpush1.msra.mxu0 0.0
  %253 = vmatprep.subr.mxu0 0.0
  %254 = vmatpush1.msra.mxu0 0.0
  %255 = vmatprep.subr.mxu0 0.0
  %256 = vmatpush1.msra.mxu0 0.0
  %257 = vmatprep.subr.mxu0 0.0
  %258 = vmatpush1.msra.mxu0 0.0
  %259 = vmatprep.subr.mxu0 0.0
  %260 = vmatpush1.msra.mxu0 0.0
  %261 = vmatprep.subr.mxu0 0.0
  %262 = vmatpush1.msra.mxu0 0.0
  %263 = vmatprep.subr.mxu0 0.0
  %264 = vmatpush1.msra.mxu0 0.0
  %265 = vmatprep.subr.mxu0 0.0
  %266 = vmatpush1.msra.mxu0 0.0
  %267 = vmatprep.subr.mxu0 0.0
  %268 = vmatpush1.msra.mxu0 0.0
  %269 = vmatprep.subr.mxu0 0.0
  %270 = vmatpush1.msra.mxu0 0.0
  %271 = vmatprep.subr.mxu0 0.0
  %272 = vmatpush1.msra.mxu0 0.0
  %273 = vmatprep.mubr.f32.mxu0 0.0
  %274 = vmatmul.mubr.f32.gmra.mrb[0].mxu0 %v195
  %v275 = vpop.f32.mrb[0].mxu0
  %v276 = vadd.f32 %v191, %v275
  %v277 = vpop.f32.mrb[0].mxu0
  %278 = vmatprep.mubr.f32.mxu0 0.0
  %279 = vmatmul.mubr.f32.gmra.mrb[0].mxu0 %v198
  %v280 = vpop.f32.mrb[0].mxu0
  %v281 = vadd.f32 %v191, %v280
  %v282 = vpop.f32.mrb[0].mxu0
  %283 = vmatprep.mubr.f32.mxu0 0.0
  %284 = vmatmul.mubr.f32.gmra.mrb[0].mxu0 %v201
  %v285 = vpop.f32.mrb[0].mxu0
  %v286 = vadd.f32 %v191, %v285
  %v287 = vpop.f32.mrb[0].mxu0
  %288 = vmatprep.mubr.f32.mxu0 0.0
  %289 = vmatmul.mubr.f32.gmra.mrb[0].mxu0 %v204
  %v290 = vpop.f32.mrb[0].mxu0
  %v291 = vadd.f32 %v191, %v290
  %v292 = vpop.f32.mrb[0].mxu0
  %293 = vdwg.mxu0
  %v294 = vmax.f32 %v276, 0.0
  %v295 = vmax.f32 %v281, 0.0
  %v296 = vmax.f32 %v286, 0.0
  %v297 = vmax.f32 %v291, 0.0
  %v298 = vld [vmem:[%s3] sm:$0xff]
  %v299 = vld [vmem:[%s3 + $0x8] sm:$0xff]
  %v300 = vld [vmem:[%s3 + $0x10] sm:$0xff]
  %v301 = vld [vmem:[%s3 + $0x18] sm:$0xff]
  %v302 = vld [vmem:[%s4] sm:$0x1]
  %v304 = vlaneseq
  %v305 = vshrl.u32 %v304, 7
  %v306 = vsub.s32 0, %v305
  %v307 = vrot.slane %v302, %v306
  %vm309 = vcmask 261120
  %v311 = vsel %vm309, %v294, 0
  %v314 = vsel %vm309, %v295, 0
  %v317 = vsel %vm309, %v296, 0
  %v320 = vsel %vm309, %v297, 0
  %322 = vmatprep.subr.mxu0 0.0
  %323 = vmatpush1.msra.mxu0 %v298
  %324 = vmatprep.subr.mxu0 0.0
  %325 = vmatpush1.msra.mxu0 %v299
  %326 = vmatprep.subr.mxu0 0.0
  %327 = vmatpush1.msra.mxu0 %v300
  %328 = vmatprep.subr.mxu0 0.0
  %329 = vmatpush1.msra.mxu0 %v301
  %330 = vmatprep.subr.mxu0 0.0
  %331 = vmatpush1.msra.mxu0 0.0
  %332 = vmatprep.subr.mxu0 0.0
  %333 = vmatpush1.msra.mxu0 0.0
  %334 = vmatprep.subr.mxu0 0.0
  %335 = vmatpush1.msra.mxu0 0.0
  %336 = vmatprep.subr.mxu0 0.0
  %337 = vmatpush1.msra.mxu0 0.0
  %338 = vmatprep.subr.mxu0 0.0
  %339 = vmatpush1.msra.mxu0 0.0
  %340 = vmatprep.subr.mxu0 0.0
  %341 = vmatpush1.msra.mxu0 0.0
  %342 = vmatprep.subr.mxu0 0.0
  %343 = vmatpush1.msra.mxu0 0.0
  %344 = vmatprep.subr.mxu0 0.0
  %345 = vmatpush1.msra.mxu0 0.0
  %346 = vmatprep.subr.mxu0 0.0
  %347 = vmatpush1.msra.mxu0 0.0
  %348 = vmatprep.subr.mxu0 0.0
  %349 = vmatpush1.msra.mxu0 0.0
  %350 = vmatprep.subr.mxu0 0.0
  %351 = vmatpush1.msra.mxu0 0.0
  %352 = vmatprep.subr.mxu0 0.0
  %353 = vmatpush1.msra.mxu0 0.0
  %354 = vmatprep.subr.mxu0 0.0
  %355 = vmatpush1.msra.mxu0 0.0
  %356 = vmatprep.subr.mxu0 0.0
  %357 = vmatpush1.msra.mxu0 0.0
  %358 = vmatprep.subr.mxu0 0.0
  %359 = vmatpush1.msra.mxu0 0.0
  %360 = vmatprep.subr.mxu0 0.0
  %361 = vmatpush1.msra.mxu0 0.0
  %362 = vmatprep.subr.mxu0 0.0
  %363 = vmatpush1.msra.mxu0 0.0
  %364 = vmatprep.subr.mxu0 0.0
  %365 = vmatpush1.msra.mxu0 0.0
  %366 = vmatprep.subr.mxu0 0.0
  %367 = vmatpush1.msra.mxu0 0.0
  %368 = vmatprep.subr.mxu0 0.0
  %369 = vmatpush1.msra.mxu0 0.0
  %370 = vmatprep.subr.mxu0 0.0
  %371 = vmatpush1.msra.mxu0 0.0
  %372 = vmatprep.subr.mxu0 0.0
  %373 = vmatpush1.msra.mxu0 0.0
  %374 = vmatprep.subr.mxu0 0.0
  %375 = vmatpush1.msra.mxu0 0.0
  %376 = vmatprep.subr.mxu0 0.0
  %377 = vmatpush1.msra.mxu0 0.0
  %378 = vmatprep.subr.mxu0 0.0
  %379 = vmatpush1.msra.mxu0 0.0
  %380 = vmatprep.subr.mxu0 0.0
  %381 = vmatpush1.msra.mxu0 0.0
  %382 = vmatprep.subr.mxu0 0.0
  %383 = vmatpush1.msra.mxu0 0.0
  %384 = vmatprep.subr.mxu0 0.0
  %385 = vmatpush1.msra.mxu0 0.0
  %386 = vmatprep.mubr.f32.mxu0 0.0
  %387 = vmatmul.mubr.f32.gmra.mrb[0].mxu0 %v311
  %v388 = vpop.f32.mrb[0].mxu0
  %v389 = vadd.f32 %v307, %v388
  %v390 = vpop.f32.mrb[0].mxu0
  %391 = vmatprep.mubr.f32.mxu0 0.0
  %392 = vmatmul.mubr.f32.gmra.mrb[0].mxu0 %v314
  %v393 = vpop.f32.mrb[0].mxu0
  %v394 = vadd.f32 %v307, %v393
  %v395 = vpop.f32.mrb[0].mxu0
  %396 = vmatprep.mubr.f32.mxu0 0.0
  %397 = vmatmul.mubr.f32.gmra.mrb[0].mxu0 %v317
  %v398 = vpop.f32.mrb[0].mxu0
  %v399 = vadd.f32 %v307, %v398
  %v400 = vpop.f32.mrb[0].mxu0
  %401 = vmatprep.mubr.f32.mxu0 0.0
  %402 = vmatmul.mubr.f32.gmra.mrb[0].mxu0 %v320
  %v403 = vpop.f32.mrb[0].mxu0
  %v404 = vadd.f32 %v307, %v403
  %v405 = vpop.f32.mrb[0].mxu0
  %406 = vdwg.mxu0
  %v407 = vmax.f32 %v389, 0.0
  %v408 = vmax.f32 %v394, 0.0
  %v409 = vmax.f32 %v399, 0.0
  %v410 = vmax.f32 %v404, 0.0
  %s411 = smul.u32 0, 16
  %s412 = ssub.s32 %s411, 4
  %v413 = vlaneseq
  %v414 = vshrl.u32 %v413, 7
  %v415 = vadd.s32 %v414, 8
  %v416 = vstv %s412
  %v417 = vadd.s32 %v416, %v414
  %v418 = vadd.s32 %v416, %v415
  %vm419 = vcmp.ge.s32.totalorder %v417, 0
  %vm420 = vcmp.ge.s32.totalorder %v418, 0
  %vm421 = vcmp.lt.s32.totalorder %v417, 12
  %vm422 = vcmp.lt.s32.totalorder %v418, 12
  %vm423 = vmand %vm419, %vm421
  %vm424 = vmand %vm420, %vm422
  %v425 = vsel %vm423, 1, 0
  %v426 = vsel %vm424, 1, 0
  %vm427 = vcmp.eq.s32.totalorder %v425, 1
  %vm428 = vcmp.eq.s32.totalorder %v426, 1
  %v429 = vsel %vm427, %v407, 0.0
  %v430 = vsel %vm428, %v408, 0.0
  %v431 = vsel %vm427, %v409, 0.0
  %v432 = vsel %vm428, %v410, 0.0
  %v433 = vld [vmem:[#allocation2] sm:$0x3]
  %vm434 = vcmask 523264
  %v435 = vsel %vm434, %v429, -inf
  %v436 = vsel %vm434, %v430, -inf
  %v437 = vmax.f32 %v435, %v436
  %v438 = vrot.slane %v437, 4
  %v439 = vmax.f32 %v437, %v438
  %v440 = vrot.slane %v439, 2
  %v441 = vmax.f32 %v439, %v440
  %v442 = vrot.slane %v441, 1
  %v443 = vmax.f32 %v441, %v442
  %v444 = vsel %vm434, %v431, -inf
  %v445 = vsel %vm434, %v432, -inf
  %v446 = vmax.f32 %v444, %v445
  %v447 = vrot.slane %v446, 4
  %v448 = vmax.f32 %v446, %v447
  %v449 = vrot.slane %v448, 2
  %v450 = vmax.f32 %v448, %v449
  %v451 = vrot.slane %v450, 1
  %v452 = vmax.f32 %v450, %v451
  %vm455 = vcmask 1041409
  %v456 = vsel %vm455, %v452, %v443
  %v458 = vmax.f32 %v433, %v456
  %vm459 = vcmask 517120
  %460 = vst.msk [vmem:[#allocation2] sm:$0x3] %vm459, %v458
  %vm461 = vcmask 162820
  %462 = vst.msk [vmem:[#allocation3 - $0x4] sm:$0xf0] %vm461, %v38
  %463 = vst.msk [vmem:[#allocation3] sm:$0xf0] %vm461, %v40
  // Predicated region
  $region34: #{tpu_custom_call.1} parent=0 // pred_check
    %p464 = pneg %p28
  $region35: #{tpu_custom_call.1} parent=0 // pred_check_branch
    %466 = sbr.rel (%p464) target = $region37
  $region36: #{tpu_custom_call.1} parent=0 // pred_region
    %v467 = vld [vmem:[#allocation2] sm:$0x3]
    %v468 = vld [vmem:[%s5] sm:$0x1]
    %v470 = vlaneseq
    %v471 = vshrl.u32 %v470, 7
    %v472 = vsub.s32 0, %v471
    %v473 = vrot.slane %v468, %v472
    %v475 = vmul.f32 %v467, %v473
    %v476 = vsel %vm459, %v475, 0.0
    %477 = vadd.xlane.f32.xlu0 %v476
    %v478 = vpop.xlane.xlu0 %477
    %v479 = vld [vmem:[#allocation4] sm:$0x1]
    %v481 = vlaneseq
    %v482 = vshrl.u32 %v481, 7
    %v483 = vsub.s32 0, %v482
    %v484 = vrot.slane %v479, %v483
    %v486 = vadd.f32 %v478, %v484
    %vm487 = vcmask 1024
    %488 = vst.msk [vmem:[%s7] sm:$0x3] %vm487, %v486
  $region37: #{tpu_custom_call.1} parent=0 // pred_fallthru
    _
  // Predicated region
  $region38: #{tpu_custom_call.1} parent=0 // pred_check
    _
  $region39: #{tpu_custom_call.1} parent=0 // pred_check_branch
    %490 = sbr.rel (0) target = $region41
  $region40: #{tpu_custom_call.1} parent=0 // pred_region
    _
  $region41: #{tpu_custom_call.1} parent=0 // pred_fallthru
    _
  // Predicated region
  $region42: #{tpu_custom_call.1} parent=0 // pred_check
    _
  $region43: #{tpu_custom_call.1} parent=0 // pred_check_branch
    %492 = sbr.rel (0) target = $region45
  $region44: #{tpu_custom_call.1} parent=0 // pred_region
    _
  $region45: #{tpu_custom_call.1} parent=0 // pred_fallthru
    _

</llo_original>
